<compile_context>
chip_gen: v6e
topology: v6e:2x2x1
jax: 0.10.0
libtpu: 0.0.40
codegen_flags: <defaults>
</compile_context>

<pallas_src>
import numpy as np
import jax
import jax.numpy as jnp
from jax.experimental import pallas as pl
from jax.experimental.pallas import tpu as pltpu


_LANE = 128          # TPU lane width
_TILE_N_MAX = 16384  # samples per grid step (lane axis); sweep 8192-32768


def _round_down(v, m):
    return (v // m) * m


def _shiftscale_kernel(x_ref, f1_ref, f2_ref, i_ref, o_ref):
    # x_ref  : (1, TN)  samples, lane-major (sublane-broadcast inside the tile)
    # f1_ref : (W, 1)   2^(J/2)   -- resident in VMEM across all grid steps
    # f2_ref : (W, 1)   2^J
    # i_ref  : (W, 1)   shifts
    # o_ref  : (W, TN)  lane-dense output tile
    x = x_ref[...]
    f1 = f1_ref[...]
    f2 = f2_ref[...]
    shift = i_ref[...]

    u = f2 * x - shift                       # (W, TN) broadcast (VPU)
    u2 = u * u
    phi = (1.0 - u2) * jnp.exp(-0.5 * u2)    # Mexican-hat; exp goes to EUP
    o_ref[...] = (f1 * phi).astype(o_ref.dtype)


class ShiftScale1DPallas:
    """JAX/Pallas port of ShiftScale1D (Mexican-hat wavelet)."""

    def __init__(self, n_shift, n_scale, out_dtype=jnp.float32):
        self.n_shift = n_shift
        self.n_scale = n_scale
        self.n_wavelet = (2 * n_shift + 1) * (2 * n_scale + 1)
        self.out_dtype = out_dtype

        # Deterministic "parameters" (same construction as the PyTorch __init__).
        I, J = np.mgrid[-n_shift:n_shift + 1, -n_scale:n_scale + 1]
        I = I.astype(np.float32)                 # (S, C) shifts
        J = J.astype(np.float32)                 # (S, C) scales
        F1 = 2.0 ** (0.5 * J)
        F2 = 2.0 ** J

        # Pre-shape once to the kernel's (W, 1) column layout; flattening is
        # row-major over (shift, scale), matching phis.reshape(n_wavelet, N).
        # W = 35 is deliberately left unpadded (write-bound kernel).
        self.I_col = jnp.asarray(I.reshape(-1, 1))    # (W, 1)
        self.F1_col = jnp.asarray(F1.reshape(-1, 1))  # (W, 1)
        self.F2_col = jnp.asarray(F2.reshape(-1, 1))  # (W, 1)

    # ---- native-layout forward: (W, N), no wrapper transpose ---------------
    def forward_wn(self, x):
        """Returns phis in the kernel's native (n_wavelet, N) layout.

        Use this when the consumer can fold the transpose (e.g. into a
        dot_general) — it avoids a full extra HBM round-trip over the output.
        """
        x_row = jnp.reshape(x, (1, -1)).astype(jnp.float32)   # (1, N) lane-major
        N = x_row.shape[1]
        W = self.n_wavelet

        # Lane-align N, then pick the largest tile <= _TILE_N_MAX that still
        # gives >= 2 grid steps when possible (v7x megacore sharding).
        n_lane = pl.cdiv(N, _LANE) * _LANE
        half = max(_LANE, _round_down(n_lane // 2, _LANE))
        tile_n = min(_TILE_N_MAX, half, n_lane)
        n_pad = pl.cdiv(n_lane, tile_n) * tile_n
        if n_pad != N:
            x_row = jnp.pad(x_row, ((0, 0), (0, n_pad - N)))

        grid = (n_pad // tile_n,)

        # Advisory cost: ~7 VPU flops + 1 transcendental per output element;
        # bytes = read x + params + write the 35x-expanded output.
        cost = pl.CostEstimate(
            flops=7 * W * n_pad,
            transcendentals=W * n_pad,
            bytes_accessed=4 * (n_pad + 3 * W) + W * n_pad * jnp.dtype(self.out_dtype).itemsize,
        )

        out_wn = pl.pallas_call(
            _shiftscale_kernel,
            out_shape=jax.ShapeDtypeStruct((W, n_pad), self.out_dtype),
            grid=grid,
            in_specs=[
                pl.BlockSpec((1, tile_n), lambda i: (0, i)),   # x: new tile each step
                pl.BlockSpec((W, 1), lambda i: (0, 0)),        # params: VMEM-resident
                pl.BlockSpec((W, 1), lambda i: (0, 0)),
                pl.BlockSpec((W, 1), lambda i: (0, 0)),
            ],
            out_specs=pl.BlockSpec((W, tile_n), lambda i: (0, i)),
            compiler_params=pltpu.CompilerParams(
                dimension_semantics=("parallel",)),
            cost_estimate=cost,
        )(x_row, self.F1_col, self.F2_col, self.I_col)

        return out_wn[:, :N]                                   # (W, N), pad dropped

    # ---- PyTorch-shaped forward: (N, W) -------------------------------------
    def __call__(self, x):
        # Matches the PyTorch module exactly: phis.reshape(n_wavelet, N).T
        # (the transpose here is an extra HBM round-trip; prefer forward_wn()
        #  when the consumer can absorb the layout).
        return self.forward_wn(x).T


def _reference(x, mod: ShiftScale1DPallas):
    """Pure-JAX reference mirroring the PyTorch forward."""
    x2d = jnp.reshape(x, (-1, 1)).astype(jnp.float32)          # (N, 1)
    f1 = mod.F1_col.reshape(1, -1)
    f2 = mod.F2_col.reshape(1, -1)
    sh = mod.I_col.reshape(1, -1)
    u = f2 * x2d - sh                                          # (N, W)
    phi = (1.0 - u * u) * jnp.exp(-0.5 * u * u)
    return f1 * phi                                            # == phis.reshape(W, N).T


if __name__ == "__main__":
    key = jax.random.PRNGKey(0)
    N = 2000                          # exercises padding (->2048) and a 2-step grid
    n_shift, n_scale = 3, 2           # -> n_wavelet = 7 * 5 = 35

    x = jax.random.normal(key, (N, 1), dtype=jnp.float32)

    mod = ShiftScale1DPallas(n_shift=n_shift, n_scale=n_scale)

    # PyTorch-shaped output (N, W)
    out = jax.block_until_ready(mod(x))
    ref = _reference(x, mod)
    assert out.shape == (N, mod.n_wavelet), out.shape
    np.testing.assert_allclose(np.asarray(out), np.asarray(ref), rtol=1e-5, atol=1e-5)

    # Native (W, N) layout path (no wrapper transpose) must match as well.
    out_wn = jax.block_until_ready(mod.forward_wn(x))
    assert out_wn.shape == (mod.n_wavelet, N), out_wn.shape
    np.testing.assert_allclose(np.asarray(out_wn), np.asarray(ref).T,
                               rtol=1e-5, atol=1e-5)

    print("KERNEL_OK")
</pallas_src>

<mosaic_0001>
module attributes {stable_mosaic.version = 11 : i64} {
  func.func @_shiftscale_kernel(%arg0: i32, %arg1: memref<1x1024xf32, #tpu.memory_space<vmem>>, %arg2: memref<35x1xf32, #tpu.memory_space<vmem>>, %arg3: memref<35x1xf32, #tpu.memory_space<vmem>>, %arg4: memref<35x1xf32, #tpu.memory_space<vmem>>, %arg5: memref<35x1024xf32, #tpu.memory_space<vmem>>) attributes {dimension_semantics = [#tpu.dimension_semantics<parallel>], iteration_bounds = array<i64: 2>, scalar_prefetch = 0 : i64, scratch_operands = 0 : i64, tpu.core_type = #tpu.core_type<tc>, window_params = [{transform_indices = @transform_0, window_bounds = array<i64: 1, 1024>}, {pipeline_mode = #tpu.pipeline_mode<synchronous>, transform_indices = @transform_1, window_bounds = array<i64: 35, 1>}, {pipeline_mode = #tpu.pipeline_mode<synchronous>, transform_indices = @transform_2, window_bounds = array<i64: 35, 1>}, {pipeline_mode = #tpu.pipeline_mode<synchronous>, transform_indices = @transform_3, window_bounds = array<i64: 35, 1>}, {transform_indices = @transform_4, window_bounds = array<i64: 35, 1024>}]} {
    %c0 = arith.constant 0 : index
    %c0_0 = arith.constant 0 : index
    %0 = vector.load %arg1[%c0, %c0_0] : memref<1x1024xf32, #tpu.memory_space<vmem>>, vector<1x1024xf32>
    %c0_1 = arith.constant 0 : index
    %c0_2 = arith.constant 0 : index
    %1 = vector.load %arg2[%c0_1, %c0_2] : memref<35x1xf32, #tpu.memory_space<vmem>>, vector<35x1xf32>
    %c0_3 = arith.constant 0 : index
    %c0_4 = arith.constant 0 : index
    %2 = vector.load %arg3[%c0_3, %c0_4] : memref<35x1xf32, #tpu.memory_space<vmem>>, vector<35x1xf32>
    %c0_5 = arith.constant 0 : index
    %c0_6 = arith.constant 0 : index
    %3 = vector.load %arg4[%c0_5, %c0_6] : memref<35x1xf32, #tpu.memory_space<vmem>>, vector<35x1xf32>
    %4 = vector.broadcast %2 : vector<35x1xf32> to vector<35x1024xf32>
    %5 = vector.broadcast %0 : vector<1x1024xf32> to vector<35x1024xf32>
    %6 = arith.mulf %4, %5 : vector<35x1024xf32>
    %7 = vector.broadcast %3 : vector<35x1xf32> to vector<35x1024xf32>
    %8 = arith.subf %6, %7 : vector<35x1024xf32>
    %9 = arith.mulf %8, %8 : vector<35x1024xf32>
    %cst = arith.constant 1.000000e+00 : f32
    %10 = vector.broadcast %cst : f32 to vector<35x1024xf32>
    %11 = arith.subf %10, %9 : vector<35x1024xf32>
    %cst_7 = arith.constant -5.000000e-01 : f32
    %12 = vector.broadcast %cst_7 : f32 to vector<35x1024xf32>
    %13 = arith.mulf %12, %9 : vector<35x1024xf32>
    %14 = math.exp %13 : vector<35x1024xf32>
    %15 = arith.mulf %11, %14 : vector<35x1024xf32>
    %16 = vector.broadcast %1 : vector<35x1xf32> to vector<35x1024xf32>
    %17 = arith.mulf %16, %15 : vector<35x1024xf32>
    %c0_8 = arith.constant 0 : index
    %c0_9 = arith.constant 0 : index
    %18 = vector.load %arg5[%c0_8, %c0_9] : memref<35x1024xf32, #tpu.memory_space<vmem>>, vector<35x1024xf32>
    tpu.vector_store %arg5[%c0_8, %c0_9], %17 {strides = array<i32>} : memref<35x1024xf32, #tpu.memory_space<vmem>>, vector<35x1024xf32>,
    return
  }
  func.func @transform_0(%arg0: i32) -> (i32, i32) {
    %c0_i32 = arith.constant 0 : i32
    %c0_i32_0 = arith.constant 0 : i32
    return %c0_i32, %arg0 : i32, i32
  }
  func.func @transform_1(%arg0: i32) -> (i32, i32) {
    %c0_i32 = arith.constant 0 : i32
    %c0_i32_0 = arith.constant 0 : i32
    %c0_i32_1 = arith.constant 0 : i32
    return %c0_i32, %c0_i32_0 : i32, i32
  }
  func.func @transform_2(%arg0: i32) -> (i32, i32) {
    %c0_i32 = arith.constant 0 : i32
    %c0_i32_0 = arith.constant 0 : i32
    %c0_i32_1 = arith.constant 0 : i32
    return %c0_i32, %c0_i32_0 : i32, i32
  }
  func.func @transform_3(%arg0: i32) -> (i32, i32) {
    %c0_i32 = arith.constant 0 : i32
    %c0_i32_0 = arith.constant 0 : i32
    %c0_i32_1 = arith.constant 0 : i32
    return %c0_i32, %c0_i32_0 : i32, i32
  }
  func.func @transform_4(%arg0: i32) -> (i32, i32) {
    %c0_i32 = arith.constant 0 : i32
    %c0_i32_0 = arith.constant 0 : i32
    return %c0_i32, %arg0 : i32, i32
  }
}

</mosaic_0001>

<llo_original>
// kernel: tpu_custom_call.1
$region0: #{tpu_custom_call.1}
  #allocation0 [shape = 'u32[]', space=smem, size = 0x4, offset = 0x4, fixed_abs, tag = 'smem constant byte address 0x4 - core index']
  #allocation1 [shape = 'u32[144,128]{1,0:T(1,128)}', space=vmem, size = 0x12000, scoped, tag = 'internal scratch']
  %s0 = inlined_call_operand.vmem [shape: f32[1,2048], index: 0, kind: input, shape index: {}]
  %s1 = inlined_call_operand.vmem [shape: f32[35,1], index: 1, kind: input, shape index: {}]
  %s2 = inlined_call_operand.vmem [shape: f32[35,1], index: 2, kind: input, shape index: {}]
  %s3 = inlined_call_operand.vmem [shape: f32[35,1], index: 3, kind: input, shape index: {}]
  %s4 = inlined_call_operand.hbm [shape: f32[35,2048], index: 4, kind: output, shape index: {}]
  %s5 = sld [smem:[#allocation0]]
  $region49: #{tpu_custom_call.1} parent=0
    _
  %s7 = ssub.s32 1, %s5
  %s8 = scalar_select 0, %s7, %s5
  $region1: #{tpu_custom_call.1} parent=0
    #allocation2 [shape = 'u8[327680]{0}', space=vmem, size = 0x50000, scoped, tag = 'output window, operand 0']
    #allocation3 [shape = 's32[2]{0}', space=sflag, size = 0x8, scoped, tag = 'scoped memory for tpu_custom_call.1']
    %9 = vsyncpa [#allocation3], 0
    %s10 = scalar_lea.sflag [#allocation3], 1
    %11 = vsyncpa %s10, 0
    loop: start=0, step=1, limit=4
    $region2: #{tpu_custom_call.1} parent=1 // loop_pre_header
      _
    $region3: #{tpu_custom_call.1} parent=1 // loop_header
      %s13 = sphi 0, %s17
      %p14 = scmp.ge.s32.totalorder %s13, 4
      %s23 = sphi 0, %s25
      %s26 = sphi 0, %s23
      %s27 = sphi 0, %s26
      %s43 = sphi 0, %s27
      %s47 = sphi 0, %s47
      %s49 = sphi 0, %s47
      %s50 = sphi 0, %s49
      %s64 = sphi 0, %s50
      %s68 = sphi 0, %s68
      %s70 = sphi 0, %s68
      %s71 = sphi 0, %s70
      %s85 = sphi 0, %s71
      %s89 = sphi 0, %s89
      %s91 = sphi 0, %s89
      %s92 = sphi 0, %s91
      %s106 = sphi 0, %s92
      %s112 = sphi 0, %s114
      %s115 = sphi 0, %s112
      %s116 = sphi 0, %s115
      %s132 = sphi 0, %s116
    $region4: #{tpu_custom_call.1} parent=1 // loop_header_branch
      %16 = sbr.rel (%p14) target = $region8
    $region5: #{tpu_custom_call.1} parent=1 // loop_body
      %s18 = ssub.s32 %s13, 1
      %s19 = ssub.s32 %s13, 2
      %s20 = sadd.s32 %s13, 1
      %s21 = ssub.s32 %s13, %s20
      %p22 = scmp.eq.s32.totalorder %s21, 0
      %s24 = sadd.s32 %s23, 1
      %s25 = scalar_select %p22, %s23, %s24
      %p28 = pneg %p22
      %p29 = scmp.eq.s32.totalorder %s13, 1
      %p30 = por %p28, %p29
      %p31 = scmp.ne.s32.totalorder %s23, %s26
      %p32 = scmp.eq.s32.totalorder %s13, 0
      %p33 = por %p31, %p32
      %p34 = scmp.ne.s32.totalorder %s23, %s26
      %p35 = scmp.eq.s32.totalorder %s18, 1
      %p36 = por %p34, %p35
      %p37 = scmp.ne.s32.totalorder %s26, %s27
      %p38 = scmp.eq.s32.totalorder %s18, 0
      %p39 = por %p37, %p38
      %p40 = scmp.ne.s32.totalorder %s26, %s27
      %p41 = scmp.eq.s32.totalorder %s19, 1
      %p42 = por %p40, %p41
      %p44 = scmp.ne.s32.totalorder %s27, %s43
      %p45 = scmp.eq.s32.totalorder %s19, 0
      %p46 = por %p44, %p45
      %s48 = sadd.s32 %s47, 1
      %p51 = scmp.eq.s32.totalorder %s13, 1
      %p52 = scmp.ne.s32.totalorder %s47, %s49
      %p53 = scmp.eq.s32.totalorder %s13, 0
      %p54 = por %p52, %p53
      %p55 = scmp.ne.s32.totalorder %s47, %s49
      %p56 = scmp.eq.s32.totalorder %s18, 1
      %p57 = por %p55, %p56
      %p58 = scmp.ne.s32.totalorder %s49, %s50
      %p59 = scmp.eq.s32.totalorder %s18, 0
      %p60 = por %p58, %p59
      %p61 = scmp.ne.s32.totalorder %s49, %s50
      %p62 = scmp.eq.s32.totalorder %s19, 1
      %p63 = por %p61, %p62
      %p65 = scmp.ne.s32.totalorder %s50, %s64
      %p66 = scmp.eq.s32.totalorder %s19, 0
      %p67 = por %p65, %p66
      %s69 = sadd.s32 %s68, 1
      %p72 = scmp.eq.s32.totalorder %s13, 1
      %p73 = scmp.ne.s32.totalorder %s68, %s70
      %p74 = scmp.eq.s32.totalorder %s13, 0
      %p75 = por %p73, %p74
      %p76 = scmp.ne.s32.totalorder %s68, %s70
      %p77 = scmp.eq.s32.totalorder %s18, 1
      %p78 = por %p76, %p77
      %p79 = scmp.ne.s32.totalorder %s70, %s71
      %p80 = scmp.eq.s32.totalorder %s18, 0
      %p81 = por %p79, %p80
      %p82 = scmp.ne.s32.totalorder %s70, %s71
      %p83 = scmp.eq.s32.totalorder %s19, 1
      %p84 = por %p82, %p83
      %p86 = scmp.ne.s32.totalorder %s71, %s85
      %p87 = scmp.eq.s32.totalorder %s19, 0
      %p88 = por %p86, %p87
      %s90 = sadd.s32 %s89, 1
      %p93 = scmp.eq.s32.totalorder %s13, 1
      %p94 = scmp.ne.s32.totalorder %s89, %s91
      %p95 = scmp.eq.s32.totalorder %s13, 0
      %p96 = por %p94, %p95
      %p97 = scmp.ne.s32.totalorder %s89, %s91
      %p98 = scmp.eq.s32.totalorder %s18, 1
      %p99 = por %p97, %p98
      %p100 = scmp.ne.s32.totalorder %s91, %s92
      %p101 = scmp.eq.s32.totalorder %s18, 0
      %p102 = por %p100, %p101
      %p103 = scmp.ne.s32.totalorder %s91, %s92
      %p104 = scmp.eq.s32.totalorder %s19, 1
      %p105 = por %p103, %p104
      %p107 = scmp.ne.s32.totalorder %s92, %s106
      %p108 = scmp.eq.s32.totalorder %s19, 0
      %p109 = por %p107, %p108
      %s110 = ssub.s32 %s13, %s20
      %p111 = scmp.eq.s32.totalorder %s110, 0
      %s113 = sadd.s32 %s112, 1
      %s114 = scalar_select %p111, %s112, %s113
      %p117 = pneg %p111
      %p118 = scmp.eq.s32.totalorder %s13, 1
      %p119 = por %p117, %p118
      %p120 = scmp.ne.s32.totalorder %s112, %s115
      %p121 = scmp.eq.s32.totalorder %s13, 0
      %p122 = por %p120, %p121
      %p123 = scmp.ne.s32.totalorder %s112, %s115
      %p124 = scmp.eq.s32.totalorder %s18, 1
      %p125 = por %p123, %p124
      %p126 = scmp.ne.s32.totalorder %s115, %s116
      %p127 = scmp.eq.s32.totalorder %s18, 0
      %p128 = por %p126, %p127
      %p129 = scmp.ne.s32.totalorder %s115, %s116
      %p130 = scmp.eq.s32.totalorder %s19, 1
      %p131 = por %p129, %p130
      %p133 = scmp.ne.s32.totalorder %s116, %s132
      %p134 = scmp.eq.s32.totalorder %s19, 0
      %p135 = por %p133, %p134
      %p136 = scmp.le.s32.totalorder 1, %s13
      %p137 = scmp.lt.s32.totalorder %s13, 3
      %p138 = pnand %p136, %p137
      %p139 = pneg %p138
      // Predicated region
      $region9: #{tpu_custom_call.1} parent=5 // pred_check
        _
      $region10: #{tpu_custom_call.1} parent=5 // pred_check_branch
        %141 = sbr.rel (%p138) target = $region12
      $region11: #{tpu_custom_call.1} parent=5 // pred_region
        %s142 = ssub.s32 %s13, 1
        // Predicated region
        $region13: #{tpu_custom_call.1} parent=11 // pred_check
          %p143 = pneg %p60
        $region14: #{tpu_custom_call.1} parent=11 // pred_check_branch
          %145 = sbr.rel (%p143) target = $region16
        $region15: #{tpu_custom_call.1} parent=11 // pred_region
          _
        $region16: #{tpu_custom_call.1} parent=11 // pred_fallthru
          _
        // Predicated region
        $region17: #{tpu_custom_call.1} parent=11 // pred_check
          %p146 = pneg %p81
        $region18: #{tpu_custom_call.1} parent=11 // pred_check_branch
          %148 = sbr.rel (%p146) target = $region20
        $region19: #{tpu_custom_call.1} parent=11 // pred_region
          _
        $region20: #{tpu_custom_call.1} parent=11 // pred_fallthru
          _
        // Predicated region
        $region21: #{tpu_custom_call.1} parent=11 // pred_check
          %p149 = pneg %p102
        $region22: #{tpu_custom_call.1} parent=11 // pred_check_branch
          %151 = sbr.rel (%p149) target = $region24
        $region23: #{tpu_custom_call.1} parent=11 // pred_region
          _
        $region24: #{tpu_custom_call.1} parent=11 // pred_fallthru
          _
      $region12: #{tpu_custom_call.1} parent=5 // pred_fallthru
        _
      %p152 = scmp.lt.s32.totalorder %s13, 2
      // Predicated region
      $region25: #{tpu_custom_call.1} parent=5 // pred_check
        %p153 = pneg %p152
      $region26: #{tpu_custom_call.1} parent=5 // pred_check_branch
        %155 = sbr.rel (%p153) target = $region28
      $region27: #{tpu_custom_call.1} parent=5 // pred_region
        // Predicated region
        $region29: #{tpu_custom_call.1} parent=27 // pred_check
          %p156 = pneg %p33
        $region30: #{tpu_custom_call.1} parent=27 // pred_check_branch
          %158 = sbr.rel (%p156) target = $region32
        $region31: #{tpu_custom_call.1} parent=27 // pred_region
          %s159 = smul.u32 8, %s13
          %p160 = scmp.lt.s32.totalorder %s159, 15
          %s161 = scalar_select %p160, %s159, 15
          %s162 = scalar_lea.vmem %s0, %s161
          %s163 = smul.u32 8, %s13
        $region32: #{tpu_custom_call.1} parent=27 // pred_fallthru
          _
      $region28: #{tpu_custom_call.1} parent=5 // pred_fallthru
        _
      %p164 = scmp.le.s32.totalorder 1, %s13
      %p165 = scmp.lt.s32.totalorder %s13, 3
      %p166 = pnand %p164, %p165
      %p167 = pneg %p166
      // Predicated region
      $region33: #{tpu_custom_call.1} parent=5 // pred_check
        _
      $region34: #{tpu_custom_call.1} parent=5 // pred_check_branch
        %169 = sbr.rel (%p166) target = $region36
      $region35: #{tpu_custom_call.1} parent=5 // pred_region
        %s170 = ssub.s32 %s13, 1
        %s171 = smul.u32 8, %s18
        %p172 = scmp.lt.s32.totalorder %s171, 15
        %s173 = scalar_select %p172, %s171, 15
        %s174 = scalar_lea.vmem %s0, %s173
        %p175 = pneg %p39
        %p176 = pneg %p36
        %p177 = pneg %p60
        %p178 = pneg %p57
        %p179 = pneg %p81
        %p180 = pneg %p78
        %p181 = pneg %p102
        %p182 = pneg %p99
        %p183 = pneg %p128
        %p184 = pneg %p125
        %s185 = sand.u32 %s115, 1
        %s186 = scalar_lea.sflag [#allocation3], %s185
        %s187 = sand.u32 %s115, 1
        %s188 = smul.addr %s187, 320
        %s189 = scalar_lea.vmem [#allocation2], %s188
        %s190 = smul.u32 8, %s18
        %p191 = scmp.lt.s32.totalorder %s190, 15
        %s192 = scalar_select %p191, %s190, 15
        %s193 = scalar_lea.vmem %s0, %s192
        %s194 = smul.u32 8, %s18
        %s195 = smul.u32 8, %s18
        %v196 = vld [vmem:[%s193] sm:$0xff]
        %v197 = vld [vmem:[%s1] sm:$0xff]
        %v198 = vld [vmem:[%s1 + $0x8] sm:$0xff]
        %v199 = vld [vmem:[%s1 + $0x10] sm:$0xff]
        %v200 = vld [vmem:[%s1 + $0x18] sm:$0xff]
        %v201 = vld [vmem:[%s1 + $0x20] sm:$0x7]
        %v202 = vld [vmem:[%s2] sm:$0xff]
        %v203 = vld [vmem:[%s2 + $0x8] sm:$0xff]
        %v204 = vld [vmem:[%s2 + $0x10] sm:$0xff]
        %v205 = vld [vmem:[%s2 + $0x18] sm:$0xff]
        %v206 = vld [vmem:[%s2 + $0x20] sm:$0x7]
        %v207 = vld [vmem:[%s3] sm:$0xff]
        %v208 = vld [vmem:[%s3 + $0x8] sm:$0xff]
        %v209 = vld [vmem:[%s3 + $0x10] sm:$0xff]
        %v210 = vld [vmem:[%s3 + $0x18] sm:$0xff]
        %v211 = vld [vmem:[%s3 + $0x20] sm:$0x7]
        %213 = vset.pattern.permute.xlu0 0
        %214 = vperm.xlu0 %213, %v202
        %v215 = vpop.permute.xlu0 %214
        %218 = vset.pattern.permute.xlu0 0
        %219 = vperm.xlu0 %218, %v203
        %v220 = vpop.permute.xlu0 %219
        %223 = vset.pattern.permute.xlu0 0
        %224 = vperm.xlu0 %223, %v204
        %v225 = vpop.permute.xlu0 %224
        %228 = vset.pattern.permute.xlu0 0
        %229 = vperm.xlu0 %228, %v205
        %v230 = vpop.permute.xlu0 %229
        %233 = vset.pattern.permute.xlu0 0
        %234 = vperm.xlu0 %233, %v206
        %v235 = vpop.permute.xlu0 %234
        %v238 = vlaneseq
        %v239 = vshrl.u32 %v238, 7
        %v240 = vsub.s32 0, %v239
        %v241 = vrot.slane %v196, %v240
        %v242 = vlaneseq
        %v243 = vshrl.u32 %v242, 7
        %v244 = vsub.s32 1, %v243
        %v245 = vrot.slane %v196, %v244
        %v246 = vlaneseq
        %v247 = vshrl.u32 %v246, 7
        %v248 = vsub.s32 2, %v247
        %v249 = vrot.slane %v196, %v248
        %v250 = vlaneseq
        %v251 = vshrl.u32 %v250, 7
        %v252 = vsub.s32 3, %v251
        %v253 = vrot.slane %v196, %v252
        %v254 = vlaneseq
        %v255 = vshrl.u32 %v254, 7
        %v256 = vsub.s32 4, %v255
        %v257 = vrot.slane %v196, %v256
        %v258 = vlaneseq
        %v259 = vshrl.u32 %v258, 7
        %v260 = vsub.s32 5, %v259
        %v261 = vrot.slane %v196, %v260
        %v262 = vlaneseq
        %v263 = vshrl.u32 %v262, 7
        %v264 = vsub.s32 6, %v263
        %v265 = vrot.slane %v196, %v264
        %v266 = vlaneseq
        %v267 = vshrl.u32 %v266, 7
        %v268 = vsub.s32 7, %v267
        %v269 = vrot.slane %v196, %v268
        %v278 = vmul.f32 %v215, %v241
        %v279 = vmul.f32 %v215, %v245
        %v280 = vmul.f32 %v215, %v249
        %v281 = vmul.f32 %v215, %v253
        %v282 = vmul.f32 %v215, %v257
        %v283 = vmul.f32 %v215, %v261
        %v284 = vmul.f32 %v215, %v265
        %v285 = vmul.f32 %v215, %v269
        %v286 = vmul.f32 %v220, %v241
        %v287 = vmul.f32 %v220, %v245
        %v288 = vmul.f32 %v220, %v249
        %v289 = vmul.f32 %v220, %v253
        %v290 = vmul.f32 %v220, %v257
        %v291 = vmul.f32 %v220, %v261
        %v292 = vmul.f32 %v220, %v265
        %v293 = vmul.f32 %v220, %v269
        %v294 = vmul.f32 %v225, %v241
        %v295 = vmul.f32 %v225, %v245
        %v296 = vmul.f32 %v225, %v249
        %v297 = vmul.f32 %v225, %v253
        %v298 = vmul.f32 %v225, %v257
        %v299 = vmul.f32 %v225, %v261
        %v300 = vmul.f32 %v225, %v265
        %v301 = vmul.f32 %v225, %v269
        %v302 = vmul.f32 %v230, %v241
        %v303 = vmul.f32 %v230, %v245
        %v304 = vmul.f32 %v230, %v249
        %v305 = vmul.f32 %v230, %v253
        %v306 = vmul.f32 %v230, %v257
        %v307 = vmul.f32 %v230, %v261
        %v308 = vmul.f32 %v230, %v265
        %v309 = vmul.f32 %v230, %v269
        %v310 = vmul.f32 %v235, %v241
        %v311 = vmul.f32 %v235, %v245
        %v312 = vmul.f32 %v235, %v249
        %v313 = vmul.f32 %v235, %v253
        %v314 = vmul.f32 %v235, %v257
        %v315 = vmul.f32 %v235, %v261
        %v316 = vmul.f32 %v235, %v265
        %v317 = vmul.f32 %v235, %v269
        %319 = vset.pattern.permute.xlu0 0
        %320 = vperm.xlu0 %319, %v207
        %v321 = vpop.permute.xlu0 %320
        %324 = vset.pattern.permute.xlu0 0
        %325 = vperm.xlu0 %324, %v208
        %v326 = vpop.permute.xlu0 %325
        %329 = vset.pattern.permute.xlu0 0
        %330 = vperm.xlu0 %329, %v209
        %v331 = vpop.permute.xlu0 %330
        %334 = vset.pattern.permute.xlu0 0
        %335 = vperm.xlu0 %334, %v210
        %v336 = vpop.permute.xlu0 %335
        %339 = vset.pattern.permute.xlu0 0
        %340 = vperm.xlu0 %339, %v211
        %v341 = vpop.permute.xlu0 %340
        %v343 = vsub.f32 %v278, %v321
        %v344 = vsub.f32 %v279, %v321
        %v345 = vsub.f32 %v280, %v321
        %v346 = vsub.f32 %v281, %v321
        %v347 = vsub.f32 %v282, %v321
        %v348 = vsub.f32 %v283, %v321
        %v349 = vsub.f32 %v284, %v321
        %v350 = vsub.f32 %v285, %v321
        %v351 = vsub.f32 %v286, %v326
        %v352 = vsub.f32 %v287, %v326
        %v353 = vsub.f32 %v288, %v326
        %v354 = vsub.f32 %v289, %v326
        %v355 = vsub.f32 %v290, %v326
        %v356 = vsub.f32 %v291, %v326
        %v357 = vsub.f32 %v292, %v326
        %v358 = vsub.f32 %v293, %v326
        %v359 = vsub.f32 %v294, %v331
        %v360 = vsub.f32 %v295, %v331
        %v361 = vsub.f32 %v296, %v331
        %v362 = vsub.f32 %v297, %v331
        %v363 = vsub.f32 %v298, %v331
        %v364 = vsub.f32 %v299, %v331
        %v365 = vsub.f32 %v300, %v331
        %v366 = vsub.f32 %v301, %v331
        %v367 = vsub.f32 %v302, %v336
        %v368 = vsub.f32 %v303, %v336
        %v369 = vsub.f32 %v304, %v336
        %v370 = vsub.f32 %v305, %v336
        %v371 = vsub.f32 %v306, %v336
        %v372 = vsub.f32 %v307, %v336
        %v373 = vsub.f32 %v308, %v336
        %v374 = vsub.f32 %v309, %v336
        %v375 = vsub.f32 %v310, %v341
        %v376 = vsub.f32 %v311, %v341
        %v377 = vsub.f32 %v312, %v341
        %v378 = vsub.f32 %v313, %v341
        %v379 = vsub.f32 %v314, %v341
        %v380 = vsub.f32 %v315, %v341
        %v381 = vsub.f32 %v316, %v341
        %v382 = vsub.f32 %v317, %v341
        %v383 = vmul.f32 %v343, %v343
        %v384 = vmul.f32 %v344, %v344
        %v385 = vmul.f32 %v345, %v345
        %v386 = vmul.f32 %v346, %v346
        %v387 = vmul.f32 %v347, %v347
        %v388 = vmul.f32 %v348, %v348
        %v389 = vmul.f32 %v349, %v349
        %v390 = vmul.f32 %v350, %v350
        %v391 = vmul.f32 %v351, %v351
        %v392 = vmul.f32 %v352, %v352
        %v393 = vmul.f32 %v353, %v353
        %v394 = vmul.f32 %v354, %v354
        %v395 = vmul.f32 %v355, %v355
        %v396 = vmul.f32 %v356, %v356
        %v397 = vmul.f32 %v357, %v357
        %v398 = vmul.f32 %v358, %v358
        %v399 = vmul.f32 %v359, %v359
        %v400 = vmul.f32 %v360, %v360
        %v401 = vmul.f32 %v361, %v361
        %v402 = vmul.f32 %v362, %v362
        %v403 = vmul.f32 %v363, %v363
        %v404 = vmul.f32 %v364, %v364
        %v405 = vmul.f32 %v365, %v365
        %v406 = vmul.f32 %v366, %v366
        %v407 = vmul.f32 %v367, %v367
        %v408 = vmul.f32 %v368, %v368
        %v409 = vmul.f32 %v369, %v369
        %v410 = vmul.f32 %v370, %v370
        %v411 = vmul.f32 %v371, %v371
        %v412 = vmul.f32 %v372, %v372
        %v413 = vmul.f32 %v373, %v373
        %v414 = vmul.f32 %v374, %v374
        %v415 = vmul.f32 %v375, %v375
        %v416 = vmul.f32 %v376, %v376
        %v417 = vmul.f32 %v377, %v377
        %v418 = vmul.f32 %v378, %v378
        %v419 = vmul.f32 %v379, %v379
        %v420 = vmul.f32 %v380, %v380
        %v421 = vmul.f32 %v381, %v381
        %v422 = vmul.f32 %v382, %v382
        %v423 = vsub.f32 1.0, %v383
        %v424 = vsub.f32 1.0, %v384
        %v425 = vsub.f32 1.0, %v385
        %v426 = vsub.f32 1.0, %v386
        %v427 = vsub.f32 1.0, %v387
        %v428 = vsub.f32 1.0, %v388
        %v429 = vsub.f32 1.0, %v389
        %v430 = vsub.f32 1.0, %v390
        %v431 = vsub.f32 1.0, %v391
        %v432 = vsub.f32 1.0, %v392
        %v433 = vsub.f32 1.0, %v393
        %v434 = vsub.f32 1.0, %v394
        %v435 = vsub.f32 1.0, %v395
        %v436 = vsub.f32 1.0, %v396
        %v437 = vsub.f32 1.0, %v397
        %v438 = vsub.f32 1.0, %v398
        %v439 = vsub.f32 1.0, %v399
        %v440 = vsub.f32 1.0, %v400
        %v441 = vsub.f32 1.0, %v401
        %v442 = vsub.f32 1.0, %v402
        %v443 = vsub.f32 1.0, %v403
        %v444 = vsub.f32 1.0, %v404
        %v445 = vsub.f32 1.0, %v405
        %v446 = vsub.f32 1.0, %v406
        %v447 = vsub.f32 1.0, %v407
        %v448 = vsub.f32 1.0, %v408
        %v449 = vsub.f32 1.0, %v409
        %v450 = vsub.f32 1.0, %v410
        %v451 = vsub.f32 1.0, %v411
        %v452 = vsub.f32 1.0, %v412
        %v453 = vsub.f32 1.0, %v413
        %v454 = vsub.f32 1.0, %v414
        %v455 = vsub.f32 1.0, %v415
        %v456 = vsub.f32 1.0, %v416
        %v457 = vsub.f32 1.0, %v417
        %v458 = vsub.f32 1.0, %v418
        %v459 = vsub.f32 1.0, %v419
        %v460 = vsub.f32 1.0, %v420
        %v461 = vsub.f32 1.0, %v421
        %v462 = vsub.f32 1.0, %v422
        %v463 = vmul.f32 %v383, -0.5
        %v464 = vmul.f32 %v384, -0.5
        %v465 = vmul.f32 %v385, -0.5
        %v466 = vmul.f32 %v386, -0.5
        %v467 = vmul.f32 %v387, -0.5
        %v468 = vmul.f32 %v388, -0.5
        %v469 = vmul.f32 %v389, -0.5
        %v470 = vmul.f32 %v390, -0.5
        %v471 = vmul.f32 %v391, -0.5
        %v472 = vmul.f32 %v392, -0.5
        %v473 = vmul.f32 %v393, -0.5
        %v474 = vmul.f32 %v394, -0.5
        %v475 = vmul.f32 %v395, -0.5
        %v476 = vmul.f32 %v396, -0.5
        %v477 = vmul.f32 %v397, -0.5
        %v478 = vmul.f32 %v398, -0.5
        %v479 = vmul.f32 %v399, -0.5
        %v480 = vmul.f32 %v400, -0.5
        %v481 = vmul.f32 %v401, -0.5
        %v482 = vmul.f32 %v402, -0.5
        %v483 = vmul.f32 %v403, -0.5
        %v484 = vmul.f32 %v404, -0.5
        %v485 = vmul.f32 %v405, -0.5
        %v486 = vmul.f32 %v406, -0.5
        %v487 = vmul.f32 %v407, -0.5
        %v488 = vmul.f32 %v408, -0.5
        %v489 = vmul.f32 %v409, -0.5
        %v490 = vmul.f32 %v410, -0.5
        %v491 = vmul.f32 %v411, -0.5
        %v492 = vmul.f32 %v412, -0.5
        %v493 = vmul.f32 %v413, -0.5
        %v494 = vmul.f32 %v414, -0.5
        %v495 = vmul.f32 %v415, -0.5
        %v496 = vmul.f32 %v416, -0.5
        %v497 = vmul.f32 %v417, -0.5
        %v498 = vmul.f32 %v418, -0.5
        %v499 = vmul.f32 %v419, -0.5
        %v500 = vmul.f32 %v420, -0.5
        %v501 = vmul.f32 %v421, -0.5
        %v502 = vmul.f32 %v422, -0.5
        %v503 = vmul.f32 %v463, 1.442695
        %v504 = vpow.pop %v503
        %v505 = vmul.f32 %v464, 1.442695
        %v506 = vpow.pop %v505
        %v507 = vmul.f32 %v465, 1.442695
        %v508 = vpow.pop %v507
        %v509 = vmul.f32 %v466, 1.442695
        %v510 = vpow.pop %v509
        %v511 = vmul.f32 %v467, 1.442695
        %v512 = vpow.pop %v511
        %v513 = vmul.f32 %v468, 1.442695
        %v514 = vpow.pop %v513
        %v515 = vmul.f32 %v469, 1.442695
        %v516 = vpow.pop %v515
        %v517 = vmul.f32 %v470, 1.442695
        %v518 = vpow.pop %v517
        %v519 = vmul.f32 %v471, 1.442695
        %v520 = vpow.pop %v519
        %v521 = vmul.f32 %v472, 1.442695
        %v522 = vpow.pop %v521
        %v523 = vmul.f32 %v473, 1.442695
        %v524 = vpow.pop %v523
        %v525 = vmul.f32 %v474, 1.442695
        %v526 = vpow.pop %v525
        %v527 = vmul.f32 %v475, 1.442695
        %v528 = vpow.pop %v527
        %v529 = vmul.f32 %v476, 1.442695
        %v530 = vpow.pop %v529
        %v531 = vmul.f32 %v477, 1.442695
        %v532 = vpow.pop %v531
        %v533 = vmul.f32 %v478, 1.442695
        %v534 = vpow.pop %v533
        %v535 = vmul.f32 %v479, 1.442695
        %v536 = vpow.pop %v535
        %v537 = vmul.f32 %v480, 1.442695
        %v538 = vpow.pop %v537
        %v539 = vmul.f32 %v481, 1.442695
        %v540 = vpow.pop %v539
        %v541 = vmul.f32 %v482, 1.442695
        %v542 = vpow.pop %v541
        %v543 = vmul.f32 %v483, 1.442695
        %v544 = vpow.pop %v543
        %v545 = vmul.f32 %v484, 1.442695
        %v546 = vpow.pop %v545
        %v547 = vmul.f32 %v485, 1.442695
        %v548 = vpow.pop %v547
        %v549 = vmul.f32 %v486, 1.442695
        %v550 = vpow.pop %v549
        %v551 = vmul.f32 %v487, 1.442695
        %v552 = vpow.pop %v551
        %v553 = vmul.f32 %v488, 1.442695
        %v554 = vpow.pop %v553
        %v555 = vmul.f32 %v489, 1.442695
        %v556 = vpow.pop %v555
        %v557 = vmul.f32 %v490, 1.442695
        %v558 = vpow.pop %v557
        %v559 = vmul.f32 %v491, 1.442695
        %v560 = vpow.pop %v559
        %v561 = vmul.f32 %v492, 1.442695
        %v562 = vpow.pop %v561
        %v563 = vmul.f32 %v493, 1.442695
        %v564 = vpow.pop %v563
        %v565 = vmul.f32 %v494, 1.442695
        %v566 = vpow.pop %v565
        %v567 = vmul.f32 %v495, 1.442695
        %v568 = vpow.pop %v567
        %v569 = vmul.f32 %v496, 1.442695
        %v570 = vpow.pop %v569
        %v571 = vmul.f32 %v497, 1.442695
        %v572 = vpow.pop %v571
        %v573 = vmul.f32 %v498, 1.442695
        %v574 = vpow.pop %v573
        %v575 = vmul.f32 %v499, 1.442695
        %v576 = vpow.pop %v575
        %v577 = vmul.f32 %v500, 1.442695
        %v578 = vpow.pop %v577
        %v579 = vmul.f32 %v501, 1.442695
        %v580 = vpow.pop %v579
        %v581 = vmul.f32 %v502, 1.442695
        %v582 = vpow.pop %v581
        %v583 = vmul.f32 %v423, %v504
        %v584 = vmul.f32 %v424, %v506
        %v585 = vmul.f32 %v425, %v508
        %v586 = vmul.f32 %v426, %v510
        %v587 = vmul.f32 %v427, %v512
        %v588 = vmul.f32 %v428, %v514
        %v589 = vmul.f32 %v429, %v516
        %v590 = vmul.f32 %v430, %v518
        %v591 = vmul.f32 %v431, %v520
        %v592 = vmul.f32 %v432, %v522
        %v593 = vmul.f32 %v433, %v524
        %v594 = vmul.f32 %v434, %v526
        %v595 = vmul.f32 %v435, %v528
        %v596 = vmul.f32 %v436, %v530
        %v597 = vmul.f32 %v437, %v532
        %v598 = vmul.f32 %v438, %v534
        %v599 = vmul.f32 %v439, %v536
        %v600 = vmul.f32 %v440, %v538
        %v601 = vmul.f32 %v441, %v540
        %v602 = vmul.f32 %v442, %v542
        %v603 = vmul.f32 %v443, %v544
        %v604 = vmul.f32 %v444, %v546
        %v605 = vmul.f32 %v445, %v548
        %v606 = vmul.f32 %v446, %v550
        %v607 = vmul.f32 %v447, %v552
        %v608 = vmul.f32 %v448, %v554
        %v609 = vmul.f32 %v449, %v556
        %v610 = vmul.f32 %v450, %v558
        %v611 = vmul.f32 %v451, %v560
        %v612 = vmul.f32 %v452, %v562
        %v613 = vmul.f32 %v453, %v564
        %v614 = vmul.f32 %v454, %v566
        %v615 = vmul.f32 %v455, %v568
        %v616 = vmul.f32 %v456, %v570
        %v617 = vmul.f32 %v457, %v572
        %v618 = vmul.f32 %v458, %v574
        %v619 = vmul.f32 %v459, %v576
        %v620 = vmul.f32 %v460, %v578
        %v621 = vmul.f32 %v461, %v580
        %v622 = vmul.f32 %v462, %v582
        %624 = vset.pattern.permute.xlu0 0
        %625 = vperm.xlu0 %624, %v197
        %v626 = vpop.permute.xlu0 %625
        %629 = vset.pattern.permute.xlu0 0
        %630 = vperm.xlu0 %629, %v198
        %v631 = vpop.permute.xlu0 %630
        %634 = vset.pattern.permute.xlu0 0
        %635 = vperm.xlu0 %634, %v199
        %v636 = vpop.permute.xlu0 %635
        %639 = vset.pattern.permute.xlu0 0
        %640 = vperm.xlu0 %639, %v200
        %v641 = vpop.permute.xlu0 %640
        %644 = vset.pattern.permute.xlu0 0
        %645 = vperm.xlu0 %644, %v201
        %v646 = vpop.permute.xlu0 %645
        %v648 = vmul.f32 %v626, %v583
        %v649 = vmul.f32 %v626, %v584
        %v650 = vmul.f32 %v626, %v585
        %v651 = vmul.f32 %v626, %v586
        %v652 = vmul.f32 %v626, %v587
        %v653 = vmul.f32 %v626, %v588
        %v654 = vmul.f32 %v626, %v589
        %v655 = vmul.f32 %v626, %v590
        %v656 = vmul.f32 %v631, %v591
        %v657 = vmul.f32 %v631, %v592
        %v658 = vmul.f32 %v631, %v593
        %v659 = vmul.f32 %v631, %v594
        %v660 = vmul.f32 %v631, %v595
        %v661 = vmul.f32 %v631, %v596
        %v662 = vmul.f32 %v631, %v597
        %v663 = vmul.f32 %v631, %v598
        %v664 = vmul.f32 %v636, %v599
        %v665 = vmul.f32 %v636, %v600
        %v666 = vmul.f32 %v636, %v601
        %v667 = vmul.f32 %v636, %v602
        %v668 = vmul.f32 %v636, %v603
        %v669 = vmul.f32 %v636, %v604
        %v670 = vmul.f32 %v636, %v605
        %v671 = vmul.f32 %v636, %v606
        %v672 = vmul.f32 %v641, %v607
        %v673 = vmul.f32 %v641, %v608
        %v674 = vmul.f32 %v641, %v609
        %v675 = vmul.f32 %v641, %v610
        %v676 = vmul.f32 %v641, %v611
        %v677 = vmul.f32 %v641, %v612
        %v678 = vmul.f32 %v641, %v613
        %v679 = vmul.f32 %v641, %v614
        %v680 = vmul.f32 %v646, %v615
        %v681 = vmul.f32 %v646, %v616
        %v682 = vmul.f32 %v646, %v617
        %v683 = vmul.f32 %v646, %v618
        %v684 = vmul.f32 %v646, %v619
        %v685 = vmul.f32 %v646, %v620
        %v686 = vmul.f32 %v646, %v621
        %v687 = vmul.f32 %v646, %v622
        %688 = vst [vmem:[%s189] sm:$0xff] %v648
        %689 = vst [vmem:[%s189 + $0x8] sm:$0xff] %v649
        %690 = vst [vmem:[%s189 + $0x10] sm:$0xff] %v650
        %691 = vst [vmem:[%s189 + $0x18] sm:$0xff] %v651
        %692 = vst [vmem:[%s189 + $0x20] sm:$0xff] %v652
        %693 = vst [vmem:[%s189 + $0x28] sm:$0xff] %v653
        %694 = vst [vmem:[%s189 + $0x30] sm:$0xff] %v654
        %695 = vst [vmem:[%s189 + $0x38] sm:$0xff] %v655
        %696 = vst [vmem:[%s189 + $0x40] sm:$0xff] %v656
        %697 = vst [vmem:[%s189 + $0x48] sm:$0xff] %v657
        %698 = vst [vmem:[%s189 + $0x50] sm:$0xff] %v658
        %699 = vst [vmem:[%s189 + $0x58] sm:$0xff] %v659
        %700 = vst [vmem:[%s189 + $0x60] sm:$0xff] %v660
        %701 = vst [vmem:[%s189 + $0x68] sm:$0xff] %v661
        %702 = vst [vmem:[%s189 + $0x70] sm:$0xff] %v662
        %703 = vst [vmem:[%s189 + $0x78] sm:$0xff] %v663
        %704 = vst [vmem:[%s189 + $0x80] sm:$0xff] %v664
        %705 = vst [vmem:[%s189 + $0x88] sm:$0xff] %v665
        %706 = vst [vmem:[%s189 + $0x90] sm:$0xff] %v666
        %707 = vst [vmem:[%s189 + $0x98] sm:$0xff] %v667
        %708 = vst [vmem:[%s189 + $0xa0] sm:$0xff] %v668
        %709 = vst [vmem:[%s189 + $0xa8] sm:$0xff] %v669
        %710 = vst [vmem:[%s189 + $0xb0] sm:$0xff] %v670
        %711 = vst [vmem:[%s189 + $0xb8] sm:$0xff] %v671
        %712 = vst [vmem:[%s189 + $0xc0] sm:$0xff] %v672
        %713 = vst [vmem:[%s189 + $0xc8] sm:$0xff] %v673
        %714 = vst [vmem:[%s189 + $0xd0] sm:$0xff] %v674
        %715 = vst [vmem:[%s189 + $0xd8] sm:$0xff] %v675
        %716 = vst [vmem:[%s189 + $0xe0] sm:$0xff] %v676
        %717 = vst [vmem:[%s189 + $0xe8] sm:$0xff] %v677
        %718 = vst [vmem:[%s189 + $0xf0] sm:$0xff] %v678
        %719 = vst [vmem:[%s189 + $0xf8] sm:$0xff] %v679
        %720 = vst [vmem:[%s189 + $0x100] sm:$0x7] %v680
        %721 = vst [vmem:[%s189 + $0x108] sm:$0x7] %v681
        %722 = vst [vmem:[%s189 + $0x110] sm:$0x7] %v682
        %723 = vst [vmem:[%s189 + $0x118] sm:$0x7] %v683
        %724 = vst [vmem:[%s189 + $0x120] sm:$0x7] %v684
        %725 = vst [vmem:[%s189 + $0x128] sm:$0x7] %v685
        %726 = vst [vmem:[%s189 + $0x130] sm:$0x7] %v686
        %727 = vst [vmem:[%s189 + $0x138] sm:$0x7] %v687
        %s728 = sand.u32 %s115, 1
        %s729 = scalar_lea.sflag [#allocation3], %s728
        %s730 = sand.u32 %s115, 1
        %s731 = smul.addr %s730, 320
        %s732 = scalar_lea.vmem [#allocation2], %s731
        // Predicated region
        $region37: #{tpu_custom_call.1} parent=35 // pred_check
          %p733 = pneg %p125
        $region38: #{tpu_custom_call.1} parent=35 // pred_check_branch
          %735 = sbr.rel (%p733) target = $region40
        $region39: #{tpu_custom_call.1} parent=35 // pred_region
          %s736 = smul.u32 8, %s18
          %s738 = ssub.s32 5120, 5120
          %739 = vsyncadd %s729, %s738
          %s740 = smul.addr %s736, 128
          %s741 = scalar_lea.hbm %s4, %s740
          %s742 = sshll.u32 %s732, 4
          %s743 = int_to_ptr.vmem [resolvable:$true] %s742
          %748 = dma.vmem_to_hbm [thread:$0]  %s743, 5120, %s741, %s729, 1024, 2048, 64
        $region40: #{tpu_custom_call.1} parent=35 // pred_fallthru
          _
      $region36: #{tpu_custom_call.1} parent=5 // pred_fallthru
        _
      %p749 = scmp.le.s32.totalorder 2, %s13
      // Predicated region
      $region41: #{tpu_custom_call.1} parent=5 // pred_check
        %p750 = pneg %p749
      $region42: #{tpu_custom_call.1} parent=5 // pred_check_branch
        %752 = sbr.rel (%p750) target = $region44
      $region43: #{tpu_custom_call.1} parent=5 // pred_region
        %s753 = ssub.s32 %s13, 2
        // Predicated region
        $region45: #{tpu_custom_call.1} parent=43 // pred_check
          %p754 = pneg %p131
        $region46: #{tpu_custom_call.1} parent=43 // pred_check_branch
          %756 = sbr.rel (%p754) target = $region48
        $region47: #{tpu_custom_call.1} parent=43 // pred_region
          %s757 = sand.u32 %s116, 1
          %s758 = scalar_lea.sflag [#allocation3], %s757
          %s759 = sand.u32 %s116, 1
          %s760 = smul.addr %s759, 320
          %s761 = scalar_lea.vmem [#allocation2], %s760
          %762 = dma.done %s758, 5120
        $region48: #{tpu_custom_call.1} parent=43 // pred_fallthru
          _
      $region44: #{tpu_custom_call.1} parent=5 // pred_fallthru
        _
    $region6: #{tpu_custom_call.1} parent=1 // loop_footer
      %s17 = sadd.s32 1, %s13
    $region7: #{tpu_custom_call.1} parent=1 // loop_footer_branch
      %12 = sbr.rel target = $region3
    $region8: #{tpu_custom_call.1} parent=1 // loop_exit
      _
    %763 = vsyncpa [#allocation3], 1
    %s764 = scalar_lea.sflag [#allocation3], 1
    %765 = vsyncpa %s764, 1

</llo_original>
